<compile_context>
chip_gen: v7x
topology: tpu7x:2x2x1
jax: 0.10.0
libtpu: 0.0.40
codegen_flags: <defaults>
</compile_context>

<pallas_src>
import functools

import jax
import jax.numpy as jnp
from jax.experimental import pallas as pl
from jax.experimental.pallas import tpu as pltpu

# ---- model dims (synthetic, small) -----------------------------------------
TEXT_DIM = 32
VISUAL_DIM = 16
ACOUSTIC_DIM = 16
HIDDEN_SIZE = TEXT_DIM          # LayerNorm(hidden_size) must match TEXT_DIM
BETA_SHIFT = 1.0
LN_EPS = 1e-5                   # torch.nn.LayerNorm default
EPS = 1e-6                      # eps used in forward()


def _cdiv(a, b):
    return -(-a // b)


def _round_up(x, m):
    return _cdiv(x, m) * m


def _choose_row_tile(n, tm_max):
    """Multiple-of-8 row tile <= tm_max. Aims for >= 2 grid steps and an even,
    roughly balanced step count (v7x shards the 'parallel' grid axis across its
    two TensorCores)."""
    n8 = _round_up(max(n, 8), 8)
    if n8 <= 8:
        return 8
    tm = min(_round_up(tm_max, 8), n8)
    steps = max(2, _cdiv(n8, tm))
    if steps % 2:
        steps += 1
    return max(8, _round_up(_cdiv(n8, steps), 8))


def mag_kernel(x_ref, w_ref, vec_ref, o_ref, *, beta_shift, dt):
    """One row tile of MAG. x = [visual | acoustic | text], shape (TM, Dv+Da+Dt)."""
    x = x_ref[...].astype(jnp.float32)                 # (TM, 64); math in f32
    t = x[:, -dt:]                                     # text features (TM, Dt)

    bias = vec_ref[0:1, :]                             # (1, 4*Dt) = [b_hv|b_ha|b_v|b_a]
    gamma = vec_ref[1:2, 0:dt]                         # (1, Dt)
    beta = vec_ref[2:3, 0:dt]                          # (1, Dt)

    # Single lane-dense MXU dot: (TM, 64) @ (64, 4*Dt).
    #   cols [0:Dt)     pre-activation of W_hv(cat(v, t))
    #   cols [Dt:2Dt)   pre-activation of W_ha(cat(a, t))
    #   cols [2Dt:3Dt)  W_v(v)
    #   cols [3Dt:4Dt)  W_a(a)
    fused = jnp.dot(x, w_ref[...].astype(jnp.float32),
                    preferred_element_type=jnp.float32) + bias

    # Gating: relu only on the first 2*Dt lanes, then one full-width multiply
    # against a 2*Dt lane rotation so relu(pre_v|pre_a) lines up with (W_v|W_a).
    lane = jax.lax.broadcasted_iota(jnp.int32, fused.shape, 1)
    gated = jnp.where(lane < 2 * dt, jnp.maximum(fused, 0.0), fused)
    prod = gated * pltpu.roll(gated, shift=2 * dt, axis=1)
    h_m = prod[:, 0:dt] + prod[:, dt:2 * dt]           # (TM, Dt)

    # Per-row gate alpha = min(||t|| / (||h_m|| + eps) * beta_shift, 1)
    # (exact division: addresses the approx-reciprocal fidelity concern; it is
    #  a (TM,1) op, cost is negligible.)
    em_norm = jnp.sqrt(jnp.sum(t * t, axis=-1, keepdims=True))
    hm_norm = jnp.sqrt(jnp.sum(h_m * h_m, axis=-1, keepdims=True))
    hm_norm = jnp.where(hm_norm == 0.0, jnp.ones_like(hm_norm), hm_norm)
    alpha = jnp.minimum(em_norm / (hm_norm + EPS) * beta_shift, 1.0)

    fused_emb = alpha * h_m + t

    # LayerNorm over the feature dim (biased variance, like torch.nn.LayerNorm)
    mean = jnp.mean(fused_emb, axis=-1, keepdims=True)
    centered = fused_emb - mean
    var = jnp.mean(centered * centered, axis=-1, keepdims=True)
    out = centered * jax.lax.rsqrt(var + LN_EPS) * gamma + beta

    # Dropout: eval-mode identity.
    # TODO(synk): the lane-dense (tm//4, 4*Dt) output packing from the perf
    # review is not applied: the required in-kernel (tm, Dt)->(tm//4, 4*Dt)
    # repack is a sublane->lane relayout that Mosaic reshape lowering does not
    # reliably support; the (tm, Dt) block is still one contiguous HBM slab,
    # so only vreg->VMEM store-slot efficiency is affected.
    o_ref[...] = out.astype(o_ref.dtype)


def mag_forward_cat(x, packed_params, *, dt=TEXT_DIM, beta_shift=BETA_SHIFT,
                    tm=2048):
    """MAG on a pre-concatenated activation stream x: (N, Dv+Da+Dt), features
    ordered [visual | acoustic | text]. Returns (N, dt) in x.dtype.

    Use this entry point when the producer already emits (or can fuse into) the
    packed layout so no extra HBM pass is spent on concatenation."""
    N, din = x.shape
    w_big, vec_params = packed_params
    assert w_big.shape == (din, 4 * dt)
    assert vec_params.shape == (3, 4 * dt)

    tm_eff = _choose_row_tile(N, tm)
    # Last block may be partial: padded-row reads are garbage but the math is
    # row-independent, and Pallas masks the out-of-bounds writes.
    grid = (_cdiv(N, tm_eff),)

    kernel = functools.partial(mag_kernel, beta_shift=beta_shift, dt=dt)

    return pl.pallas_call(
        kernel,
        out_shape=jax.ShapeDtypeStruct((N, dt), x.dtype),
        grid_spec=pltpu.PrefetchScalarGridSpec(
            num_scalar_prefetch=0,
            grid=grid,
            in_specs=[
                pl.BlockSpec((tm_eff, din), lambda i: (i, 0)),   # activations
                pl.BlockSpec((din, 4 * dt), lambda i: (0, 0)),   # packed weights
                pl.BlockSpec((3, 4 * dt), lambda i: (0, 0)),     # bias|gamma|beta
            ],
            out_specs=pl.BlockSpec((tm_eff, dt), lambda i: (i, 0)),
        ),
        # tm<=2048 fits all generations' default scoped-VMEM (incl. v5e 16 MiB);
        # to sweep tm upward on v6e/v7x, also set vmem_limit_bytes here.
        compiler_params=pltpu.CompilerParams(
            dimension_semantics=("parallel",)),
    )(x, w_big, vec_params)


def mag_forward(text, visual, acoustic, packed_params, *,
                beta_shift=BETA_SHIFT, tm=2048):
    """text: (B,S,TEXT_DIM), visual: (B,S,VISUAL_DIM), acoustic: (B,S,ACOUSTIC_DIM).

    No wrapper-side padding, dtype casts, or output slicing. The concat below
    builds the single 64-lane activation stream; under jit it fuses with
    upstream producers (call mag_forward_cat directly if the producer already
    emits the packed layout)."""
    B, S, Dt = text.shape
    Dv = visual.shape[-1]
    Da = acoustic.shape[-1]
    N = B * S
    x = jnp.concatenate(
        [visual.reshape(N, Dv), acoustic.reshape(N, Da), text.reshape(N, Dt)],
        axis=-1)
    out = mag_forward_cat(x, packed_params, dt=Dt, beta_shift=beta_shift, tm=tm)
    return out.reshape(B, S, Dt)


# ---- parameter construction -------------------------------------------------

def init_raw_params(key):
    """Deterministic synthetic parameters matching the MAG module shapes.

    Weights are stored transposed, i.e. (in_features, out_features), so the
    reference / kernel compute x @ W + b (equivalent to torch Linear)."""
    ks = jax.random.split(key, 8)
    scale = 0.02
    w_hv = scale * jax.random.normal(ks[0], (VISUAL_DIM + TEXT_DIM, TEXT_DIM), jnp.float32)
    b_hv = scale * jax.random.normal(ks[1], (TEXT_DIM,), jnp.float32)
    w_ha = scale * jax.random.normal(ks[2], (ACOUSTIC_DIM + TEXT_DIM, TEXT_DIM), jnp.float32)
    b_ha = scale * jax.random.normal(ks[3], (TEXT_DIM,), jnp.float32)
    w_v = scale * jax.random.normal(ks[4], (VISUAL_DIM, TEXT_DIM), jnp.float32)
    b_v = scale * jax.random.normal(ks[5], (TEXT_DIM,), jnp.float32)
    w_a = scale * jax.random.normal(ks[6], (ACOUSTIC_DIM, TEXT_DIM), jnp.float32)
    b_a = scale * jax.random.normal(ks[7], (TEXT_DIM,), jnp.float32)
    gamma = jnp.ones((TEXT_DIM,), jnp.float32)   # torch LayerNorm default init
    beta = jnp.zeros((TEXT_DIM,), jnp.float32)
    return (w_hv, b_hv, w_ha, b_ha, w_v, b_v, w_a, b_a, gamma, beta)


def pack_params(w_hv, b_hv, w_ha, b_ha, w_v, b_v, w_a, b_a, gamma, beta, *,
                weights_dtype=jnp.float32):
    """Pack the six small Linear/LayerNorm params into:
       w_big : (Dv+Da+Dt, 4*Dt) block weight, rows = [visual|acoustic|text],
               cols = [pre_v | pre_a | W_v | W_a]
       vec   : (3, 4*Dt) with row0 = [b_hv|b_ha|b_v|b_a], row1 = [gamma|0..],
               row2 = [beta|0..].
    weights_dtype=bf16 is optional (v6e: fewer MXU passes / half the weight
    DMA); bias / gamma / beta always stay f32."""
    Dv, Da, Dt = VISUAL_DIM, ACOUSTIC_DIM, TEXT_DIM
    Z = lambda r, c: jnp.zeros((r, c), jnp.float32)
    row_v = jnp.concatenate([w_hv[:Dv], Z(Dv, Dt), w_v, Z(Dv, Dt)], axis=1)
    row_a = jnp.concatenate([Z(Da, Dt), w_ha[:Da], Z(Da, Dt), w_a], axis=1)
    row_t = jnp.concatenate([w_hv[Dv:], w_ha[Da:], Z(Dt, Dt), Z(Dt, Dt)], axis=1)
    w_big = jnp.concatenate([row_v, row_a, row_t], axis=0)          # (64, 128)

    bias_row = jnp.concatenate([b_hv, b_ha, b_v, b_a])[None, :]     # (1, 128)
    gamma_row = jnp.concatenate([gamma, jnp.zeros(3 * Dt, jnp.float32)])[None, :]
    beta_row = jnp.concatenate([beta, jnp.zeros(3 * Dt, jnp.float32)])[None, :]
    vec = jnp.concatenate([bias_row, gamma_row, beta_row], axis=0)  # (3, 128)
    return w_big.astype(weights_dtype), vec


# ---- pure-JAX reference (matches the torch module, eval mode) ---------------

def mag_reference(text, visual, acoustic, raw_params, *, beta_shift=BETA_SHIFT):
    (w_hv, b_hv, w_ha, b_ha, w_v, b_v, w_a, b_a, gamma, beta) = raw_params
    weight_v = jax.nn.relu(jnp.concatenate([visual, text], -1) @ w_hv + b_hv)
    weight_a = jax.nn.relu(jnp.concatenate([acoustic, text], -1) @ w_ha + b_ha)
    h_m = weight_v * (visual @ w_v + b_v) + weight_a * (acoustic @ w_a + b_a)
    em_norm = jnp.linalg.norm(text, axis=-1)
    hm_norm = jnp.linalg.norm(h_m, axis=-1)
    hm_norm = jnp.where(hm_norm == 0.0, 1.0, hm_norm)
    thresh = em_norm / (hm_norm + EPS) * beta_shift
    alpha = jnp.minimum(thresh, 1.0)[..., None]
    fused = alpha * h_m + text
    mean = fused.mean(-1, keepdims=True)
    var = ((fused - mean) ** 2).mean(-1, keepdims=True)
    normed = (fused - mean) * jax.lax.rsqrt(var + LN_EPS)
    return normed * gamma + beta                     # dropout = eval identity


if __name__ == "__main__":
    key = jax.random.PRNGKey(0)
    k_t, k_v, k_a, k_p, k_t2, k_v2, k_a2 = jax.random.split(key, 7)

    raw_params = init_raw_params(k_p)
    packed = pack_params(*raw_params)
    run = jax.jit(mag_forward)

    # 1) Small f32 case (B=2, S=8) checked against the pure-JAX reference.
    B, S = 2, 8
    text = jax.random.normal(k_t, (B, S, TEXT_DIM), jnp.float32)
    visual = jax.random.normal(k_v, (B, S, VISUAL_DIM), jnp.float32)
    acoustic = jax.random.normal(k_a, (B, S, ACOUSTIC_DIM), jnp.float32)
    out = run(text, visual, acoustic, packed)
    jax.block_until_ready(out)
    assert out.shape == (B, S, TEXT_DIM)
    assert bool(jnp.all(jnp.isfinite(out)))
    ref = mag_reference(text, visual, acoustic, raw_params)
    err = float(jnp.max(jnp.abs(out - ref)))
    assert err < 1e-2, f"f32 max abs error vs reference: {err}"

    # 2) Multi-step grid with a partial tail block (N = 3*1337 = 4011 rows ->
    #    two ~2008-row tiles, last one masked). Exercises the no-pad/no-slice path.
    B2, S2 = 3, 1337
    text2 = jax.random.normal(k_t2, (B2, S2, TEXT_DIM), jnp.float32)
    visual2 = jax.random.normal(k_v2, (B2, S2, VISUAL_DIM), jnp.float32)
    acoustic2 = jax.random.normal(k_a2, (B2, S2, ACOUSTIC_DIM), jnp.float32)
    out2 = run(text2, visual2, acoustic2, packed)
    jax.block_until_ready(out2)
    assert out2.shape == (B2, S2, TEXT_DIM)
    ref2 = mag_reference(text2, visual2, acoustic2, raw_params)
    err2 = float(jnp.max(jnp.abs(out2 - ref2)))
    assert err2 < 1e-2, f"tiled f32 max abs error vs reference: {err2}"

    # 3) bf16-producer path: inputs already bf16 (no wrapper-side cast); math
    #    stays f32 in-kernel, output is bf16. Validated against the f32 reference.
    out_bf16 = run(text.astype(jnp.bfloat16), visual.astype(jnp.bfloat16),
                   acoustic.astype(jnp.bfloat16), packed)
    jax.block_until_ready(out_bf16)
    assert out_bf16.shape == (B, S, TEXT_DIM)
    assert out_bf16.dtype == jnp.bfloat16
    err_bf16 = float(jnp.max(jnp.abs(out_bf16.astype(jnp.float32) - ref)))
    assert err_bf16 < 1e-1, f"bf16 max abs error vs reference: {err_bf16}"

    print("KERNEL_OK")
</pallas_src>

<mosaic_0001>
module attributes {stable_mosaic.version = 11 : i64} {
  func.func @mag_kernel(%arg0: i32, %arg1: memref<8x64xf32, #tpu.memory_space<vmem>>, %arg2: memref<64x128xf32, #tpu.memory_space<vmem>>, %arg3: memref<3x128xf32, #tpu.memory_space<vmem>>, %arg4: memref<8x32xf32, #tpu.memory_space<vmem>>) attributes {dimension_semantics = [#tpu.dimension_semantics<parallel>], iteration_bounds = array<i64: 2>, scalar_prefetch = 0 : i64, scratch_operands = 0 : i64, tpu.core_type = #tpu.core_type<tc>, window_params = [{transform_indices = @transform_0, window_bounds = array<i64: 8, 64>}, {pipeline_mode = #tpu.pipeline_mode<synchronous>, transform_indices = @transform_1, window_bounds = array<i64: 64, 128>}, {pipeline_mode = #tpu.pipeline_mode<synchronous>, transform_indices = @transform_2, window_bounds = array<i64: 3, 128>}, {transform_indices = @transform_3, window_bounds = array<i64: 8, 32>}]} {
    %c0 = arith.constant 0 : index
    %c0_0 = arith.constant 0 : index
    %0 = vector.load %arg1[%c0, %c0_0] : memref<8x64xf32, #tpu.memory_space<vmem>>, vector<8x64xf32>
    %1 = vector.extract_strided_slice %0 {offsets = [0, 32], sizes = [8, 32], strides = [1, 1]} : vector<8x64xf32> to vector<8x32xf32>
    %c0_1 = arith.constant 0 : index
    %c0_2 = arith.constant 0 : index
    %2 = vector.load %arg3[%c0_1, %c0_2] : memref<3x128xf32, #tpu.memory_space<vmem>>, vector<1x128xf32>
    %c1 = arith.constant 1 : index
    %c0_3 = arith.constant 0 : index
    %3 = vector.load %arg3[%c1, %c0_3] : memref<3x128xf32, #tpu.memory_space<vmem>>, vector<1x32xf32>
    %c2 = arith.constant 2 : index
    %c0_4 = arith.constant 0 : index
    %4 = vector.load %arg3[%c2, %c0_4] : memref<3x128xf32, #tpu.memory_space<vmem>>, vector<1x32xf32>
    %c0_5 = arith.constant 0 : index
    %c0_6 = arith.constant 0 : index
    %5 = vector.load %arg2[%c0_5, %c0_6] : memref<64x128xf32, #tpu.memory_space<vmem>>, vector<64x128xf32>
    %cst = arith.constant dense<0.000000e+00> : vector<8x128xf32>
    %6 = tpu.matmul %0, %5, %cst {dimension_numbers = #tpu.dot_dimension_numbers<[1], [0], [0], [1], [0, 0, 1, 1], [], []>} : vector<8x64xf32>, vector<64x128xf32>, vector<8x128xf32> -> vector<8x128xf32>
    %7 = vector.broadcast %2 : vector<1x128xf32> to vector<8x128xf32>
    %8 = arith.addf %6, %7 : vector<8x128xf32>
    %9 = tpu.iota {dimensions = array<i32: 1>} : vector<8x128xi32>
    %c64_i32 = arith.constant 64 : i32
    %10 = vector.broadcast %c64_i32 : i32 to vector<8x128xi32>
    %11 = arith.cmpi slt, %9, %10 : vector<8x128xi32>
    %cst_7 = arith.constant 0.000000e+00 : f32
    %12 = vector.broadcast %cst_7 : f32 to vector<8x128xf32>
    %13 = arith.maximumf %8, %12 : vector<8x128xf32>
    %14 = arith.select %11, %13, %8 : vector<8x128xi1>, vector<8x128xf32>
    %c64_i32_8 = arith.constant 64 : i32
    %15 = tpu.dynamic_rotate %14 by %c64_i32_8 dim 1 : vector<8x128xf32>, i32 -> vector<8x128xf32>
    %16 = arith.mulf %14, %15 : vector<8x128xf32>
    %17 = vector.extract_strided_slice %16 {offsets = [0, 0], sizes = [8, 32], strides = [1, 1]} : vector<8x128xf32> to vector<8x32xf32>
    %18 = vector.extract_strided_slice %16 {offsets = [0, 32], sizes = [8, 32], strides = [1, 1]} : vector<8x128xf32> to vector<8x32xf32>
    %19 = arith.addf %17, %18 : vector<8x32xf32>
    %20 = arith.mulf %1, %1 : vector<8x32xf32>
    %cst_9 = arith.constant dense<0.000000e+00> : vector<8xf32>
    %21 = vector.multi_reduction <add>, %20, %cst_9 [1] : vector<8x32xf32> to vector<8xf32>
    %22 = vector.shape_cast %21 : vector<8xf32> to vector<8x1xf32>
    %23 = math.sqrt %22 : vector<8x1xf32>
    %24 = arith.mulf %19, %19 : vector<8x32xf32>
    %cst_10 = arith.constant dense<0.000000e+00> : vector<8xf32>
    %25 = vector.multi_reduction <add>, %24, %cst_10 [1] : vector<8x32xf32> to vector<8xf32>
    %26 = vector.shape_cast %25 : vector<8xf32> to vector<8x1xf32>
    %27 = math.sqrt %26 : vector<8x1xf32>
    %cst_11 = arith.constant 0.000000e+00 : f32
    %28 = vector.broadcast %cst_11 : f32 to vector<8x1xf32>
    %29 = arith.cmpf oeq, %27, %28 : vector<8x1xf32>
    %cst_12 = arith.constant 1.000000e+00 : f32
    %30 = vector.broadcast %cst_12 : f32 to vector<8x1xf32>
    %31 = arith.select %29, %30, %27 : vector<8x1xi1>, vector<8x1xf32>
    %cst_13 = arith.constant 9.99999997E-7 : f32
    %32 = vector.broadcast %cst_13 : f32 to vector<8x1xf32>
    %33 = arith.addf %31, %32 : vector<8x1xf32>
    %34 = arith.divf %23, %33 : vector<8x1xf32>
    %cst_14 = arith.constant 1.000000e+00 : f32
    %35 = vector.broadcast %cst_14 : f32 to vector<8x1xf32>
    %36 = arith.mulf %34, %35 : vector<8x1xf32>
    %cst_15 = arith.constant 1.000000e+00 : f32
    %37 = vector.broadcast %cst_15 : f32 to vector<8x1xf32>
    %38 = arith.minimumf %36, %37 : vector<8x1xf32>
    %39 = vector.broadcast %38 : vector<8x1xf32> to vector<8x32xf32>
    %40 = arith.mulf %39, %19 : vector<8x32xf32>
    %41 = arith.addf %40, %1 : vector<8x32xf32>
    %cst_16 = arith.constant dense<0.000000e+00> : vector<8xf32>
    %42 = vector.multi_reduction <add>, %41, %cst_16 [1] : vector<8x32xf32> to vector<8xf32>
    %43 = vector.shape_cast %42 : vector<8xf32> to vector<8x1xf32>
    %cst_17 = arith.constant 3.200000e+01 : f32
    %44 = vector.broadcast %cst_17 : f32 to vector<8x1xf32>
    %45 = arith.divf %43, %44 : vector<8x1xf32>
    %46 = vector.broadcast %45 : vector<8x1xf32> to vector<8x32xf32>
    %47 = arith.subf %41, %46 : vector<8x32xf32>
    %48 = arith.mulf %47, %47 : vector<8x32xf32>
    %cst_18 = arith.constant dense<0.000000e+00> : vector<8xf32>
    %49 = vector.multi_reduction <add>, %48, %cst_18 [1] : vector<8x32xf32> to vector<8xf32>
    %50 = vector.shape_cast %49 : vector<8xf32> to vector<8x1xf32>
    %cst_19 = arith.constant 3.200000e+01 : f32
    %51 = vector.broadcast %cst_19 : f32 to vector<8x1xf32>
    %52 = arith.divf %50, %51 : vector<8x1xf32>
    %cst_20 = arith.constant 9.99999974E-6 : f32
    %53 = vector.broadcast %cst_20 : f32 to vector<8x1xf32>
    %54 = arith.addf %52, %53 : vector<8x1xf32>
    %55 = math.rsqrt %54 : vector<8x1xf32>
    %56 = vector.broadcast %55 : vector<8x1xf32> to vector<8x32xf32>
    %57 = arith.mulf %47, %56 : vector<8x32xf32>
    %58 = vector.broadcast %3 : vector<1x32xf32> to vector<8x32xf32>
    %59 = arith.mulf %57, %58 : vector<8x32xf32>
    %60 = vector.broadcast %4 : vector<1x32xf32> to vector<8x32xf32>
    %61 = arith.addf %59, %60 : vector<8x32xf32>
    %c0_21 = arith.constant 0 : index
    %c0_22 = arith.constant 0 : index
    %62 = vector.load %arg4[%c0_21, %c0_22] : memref<8x32xf32, #tpu.memory_space<vmem>>, vector<8x32xf32>
    tpu.vector_store %arg4[%c0_21, %c0_22], %61 {strides = array<i32>} : memref<8x32xf32, #tpu.memory_space<vmem>>, vector<8x32xf32>,
    return
  }
  func.func @transform_0(%arg0: i32) -> (i32, i32) {
    %c0_i32 = arith.constant 0 : i32
    %c0_i32_0 = arith.constant 0 : i32
    return %arg0, %c0_i32 : i32, i32
  }
  func.func @transform_1(%arg0: i32) -> (i32, i32) {
    %c0_i32 = arith.constant 0 : i32
    %c0_i32_0 = arith.constant 0 : i32
    %c0_i32_1 = arith.constant 0 : i32
    return %c0_i32, %c0_i32_0 : i32, i32
  }
  func.func @transform_2(%arg0: i32) -> (i32, i32) {
    %c0_i32 = arith.constant 0 : i32
    %c0_i32_0 = arith.constant 0 : i32
    %c0_i32_1 = arith.constant 0 : i32
    return %c0_i32, %c0_i32_0 : i32, i32
  }
  func.func @transform_3(%arg0: i32) -> (i32, i32) {
    %c0_i32 = arith.constant 0 : i32
    %c0_i32_0 = arith.constant 0 : i32
    return %arg0, %c0_i32 : i32, i32
  }
}

</mosaic_0001>

<llo_original>
// kernel: mag_forward.1
$region0: #{mag_forward.1}
  #allocation0 [shape = 'u32[]', space=smem, size = 0x4, offset = 0x4, fixed_abs, tag = 'smem constant byte address 0x4 - core index']
  #allocation1 [shape = 'u32[144,128]{1,0:T(1,128)}', space=vmem, size = 0x12000, scoped, tag = 'internal scratch']
  %s0 = inlined_call_operand.vmem [shape: f32[16,64], index: 0, kind: input, shape index: {}]
  %s1 = inlined_call_operand.vmem [shape: f32[64,128], index: 1, kind: input, shape index: {}]
  %s2 = inlined_call_operand.vmem [shape: f32[3,128], index: 2, kind: input, shape index: {}]
  %s3 = inlined_call_operand.hbm [shape: f32[16,32], index: 3, kind: output, shape index: {}]
  %s4 = sld [smem:[#allocation0]]
  $region45: #{mag_forward.1} parent=0
    _
  %s6 = ssub.s32 1, %s4
  %s7 = scalar_select 0, %s6, %s4
  $region1: #{mag_forward.1} parent=0
    #allocation2 [shape = 'u8[8192]{0}', space=vmem, size = 0x2000, scoped, tag = 'output window, operand 0']
    #allocation3 [shape = 's32[2]{0}', space=sflag, size = 0x8, scoped, tag = 'scoped memory for mag_forward.1']
    %8 = vsyncpa [#allocation3], 0
    %s9 = scalar_lea.sflag [#allocation3], 1
    %10 = vsyncpa %s9, 0
    loop: start=0, step=1, limit=4
    $region2: #{mag_forward.1} parent=1 // loop_pre_header
      _
    $region3: #{mag_forward.1} parent=1 // loop_header
      %s12 = sphi 0, %s16
      %p13 = scmp.ge.s32.totalorder %s12, 4
      %s22 = sphi 0, %s24
      %s25 = sphi 0, %s22
      %s26 = sphi 0, %s25
      %s42 = sphi 0, %s26
      %s46 = sphi 0, %s46
      %s48 = sphi 0, %s46
      %s49 = sphi 0, %s48
      %s63 = sphi 0, %s49
      %s67 = sphi 0, %s67
      %s69 = sphi 0, %s67
      %s70 = sphi 0, %s69
      %s84 = sphi 0, %s70
      %s90 = sphi 0, %s92
      %s93 = sphi 0, %s90
      %s94 = sphi 0, %s93
      %s110 = sphi 0, %s94
    $region4: #{mag_forward.1} parent=1 // loop_header_branch
      %15 = sbr.rel (%p13) target = $region8
    $region5: #{mag_forward.1} parent=1 // loop_body
      %s17 = ssub.s32 %s12, 1
      %s18 = ssub.s32 %s12, 2
      %s19 = sadd.s32 %s12, 1
      %s20 = ssub.s32 %s12, %s19
      %p21 = scmp.eq.s32.totalorder %s20, 0
      %s23 = sadd.s32 %s22, 1
      %s24 = scalar_select %p21, %s22, %s23
      %p27 = pneg %p21
      %p28 = scmp.eq.s32.totalorder %s12, 1
      %p29 = por %p27, %p28
      %p30 = scmp.ne.s32.totalorder %s22, %s25
      %p31 = scmp.eq.s32.totalorder %s12, 0
      %p32 = por %p30, %p31
      %p33 = scmp.ne.s32.totalorder %s22, %s25
      %p34 = scmp.eq.s32.totalorder %s17, 1
      %p35 = por %p33, %p34
      %p36 = scmp.ne.s32.totalorder %s25, %s26
      %p37 = scmp.eq.s32.totalorder %s17, 0
      %p38 = por %p36, %p37
      %p39 = scmp.ne.s32.totalorder %s25, %s26
      %p40 = scmp.eq.s32.totalorder %s18, 1
      %p41 = por %p39, %p40
      %p43 = scmp.ne.s32.totalorder %s26, %s42
      %p44 = scmp.eq.s32.totalorder %s18, 0
      %p45 = por %p43, %p44
      %s47 = sadd.s32 %s46, 1
      %p50 = scmp.eq.s32.totalorder %s12, 1
      %p51 = scmp.ne.s32.totalorder %s46, %s48
      %p52 = scmp.eq.s32.totalorder %s12, 0
      %p53 = por %p51, %p52
      %p54 = scmp.ne.s32.totalorder %s46, %s48
      %p55 = scmp.eq.s32.totalorder %s17, 1
      %p56 = por %p54, %p55
      %p57 = scmp.ne.s32.totalorder %s48, %s49
      %p58 = scmp.eq.s32.totalorder %s17, 0
      %p59 = por %p57, %p58
      %p60 = scmp.ne.s32.totalorder %s48, %s49
      %p61 = scmp.eq.s32.totalorder %s18, 1
      %p62 = por %p60, %p61
      %p64 = scmp.ne.s32.totalorder %s49, %s63
      %p65 = scmp.eq.s32.totalorder %s18, 0
      %p66 = por %p64, %p65
      %s68 = sadd.s32 %s67, 1
      %p71 = scmp.eq.s32.totalorder %s12, 1
      %p72 = scmp.ne.s32.totalorder %s67, %s69
      %p73 = scmp.eq.s32.totalorder %s12, 0
      %p74 = por %p72, %p73
      %p75 = scmp.ne.s32.totalorder %s67, %s69
      %p76 = scmp.eq.s32.totalorder %s17, 1
      %p77 = por %p75, %p76
      %p78 = scmp.ne.s32.totalorder %s69, %s70
      %p79 = scmp.eq.s32.totalorder %s17, 0
      %p80 = por %p78, %p79
      %p81 = scmp.ne.s32.totalorder %s69, %s70
      %p82 = scmp.eq.s32.totalorder %s18, 1
      %p83 = por %p81, %p82
      %p85 = scmp.ne.s32.totalorder %s70, %s84
      %p86 = scmp.eq.s32.totalorder %s18, 0
      %p87 = por %p85, %p86
      %s88 = ssub.s32 %s12, %s19
      %p89 = scmp.eq.s32.totalorder %s88, 0
      %s91 = sadd.s32 %s90, 1
      %s92 = scalar_select %p89, %s90, %s91
      %p95 = pneg %p89
      %p96 = scmp.eq.s32.totalorder %s12, 1
      %p97 = por %p95, %p96
      %p98 = scmp.ne.s32.totalorder %s90, %s93
      %p99 = scmp.eq.s32.totalorder %s12, 0
      %p100 = por %p98, %p99
      %p101 = scmp.ne.s32.totalorder %s90, %s93
      %p102 = scmp.eq.s32.totalorder %s17, 1
      %p103 = por %p101, %p102
      %p104 = scmp.ne.s32.totalorder %s93, %s94
      %p105 = scmp.eq.s32.totalorder %s17, 0
      %p106 = por %p104, %p105
      %p107 = scmp.ne.s32.totalorder %s93, %s94
      %p108 = scmp.eq.s32.totalorder %s18, 1
      %p109 = por %p107, %p108
      %p111 = scmp.ne.s32.totalorder %s94, %s110
      %p112 = scmp.eq.s32.totalorder %s18, 0
      %p113 = por %p111, %p112
      %p114 = scmp.le.s32.totalorder 1, %s12
      %p115 = scmp.lt.s32.totalorder %s12, 3
      %p116 = pnand %p114, %p115
      %p117 = pneg %p116
      // Predicated region
      $region9: #{mag_forward.1} parent=5 // pred_check
        _
      $region10: #{mag_forward.1} parent=5 // pred_check_branch
        %119 = sbr.rel (%p116) target = $region12
      $region11: #{mag_forward.1} parent=5 // pred_region
        %s120 = ssub.s32 %s12, 1
        // Predicated region
        $region13: #{mag_forward.1} parent=11 // pred_check
          %p121 = pneg %p59
        $region14: #{mag_forward.1} parent=11 // pred_check_branch
          %123 = sbr.rel (%p121) target = $region16
        $region15: #{mag_forward.1} parent=11 // pred_region
          _
        $region16: #{mag_forward.1} parent=11 // pred_fallthru
          _
        // Predicated region
        $region17: #{mag_forward.1} parent=11 // pred_check
          %p124 = pneg %p80
        $region18: #{mag_forward.1} parent=11 // pred_check_branch
          %126 = sbr.rel (%p124) target = $region20
        $region19: #{mag_forward.1} parent=11 // pred_region
          _
        $region20: #{mag_forward.1} parent=11 // pred_fallthru
          _
      $region12: #{mag_forward.1} parent=5 // pred_fallthru
        _
      %p127 = scmp.lt.s32.totalorder %s12, 2
      // Predicated region
      $region21: #{mag_forward.1} parent=5 // pred_check
        %p128 = pneg %p127
      $region22: #{mag_forward.1} parent=5 // pred_check_branch
        %130 = sbr.rel (%p128) target = $region24
      $region23: #{mag_forward.1} parent=5 // pred_region
        // Predicated region
        $region25: #{mag_forward.1} parent=23 // pred_check
          %p131 = pneg %p32
        $region26: #{mag_forward.1} parent=23 // pred_check_branch
          %133 = sbr.rel (%p131) target = $region28
        $region27: #{mag_forward.1} parent=23 // pred_region
          %p134 = scmp.lt.s32.totalorder %s12, 1
          %s135 = scalar_select %p134, %s12, 1
          %s136 = smul.addr %s135, 8
          %s137 = scalar_lea.vmem %s0, %s136
        $region28: #{mag_forward.1} parent=23 // pred_fallthru
          _
      $region24: #{mag_forward.1} parent=5 // pred_fallthru
        _
      %p138 = scmp.le.s32.totalorder 1, %s12
      %p139 = scmp.lt.s32.totalorder %s12, 3
      %p140 = pnand %p138, %p139
      %p141 = pneg %p140
      // Predicated region
      $region29: #{mag_forward.1} parent=5 // pred_check
        _
      $region30: #{mag_forward.1} parent=5 // pred_check_branch
        %143 = sbr.rel (%p140) target = $region32
      $region31: #{mag_forward.1} parent=5 // pred_region
        %s144 = ssub.s32 %s12, 1
        %p145 = scmp.lt.s32.totalorder %s17, 1
        %s146 = scalar_select %p145, %s17, 1
        %s147 = smul.addr %s146, 8
        %s148 = scalar_lea.vmem %s0, %s147
        %p149 = pneg %p38
        %p150 = pneg %p35
        %p151 = pneg %p59
        %p152 = pneg %p56
        %p153 = pneg %p80
        %p154 = pneg %p77
        %p155 = pneg %p106
        %p156 = pneg %p103
        %s157 = sand.u32 %s93, 1
        %s158 = scalar_lea.sflag [#allocation3], %s157
        %s159 = sand.u32 %s93, 1
        %s160 = smul.addr %s159, 8
        %s161 = scalar_lea.vmem [#allocation2], %s160
        %p162 = scmp.lt.s32.totalorder %s17, 1
        %s163 = scalar_select %p162, %s17, 1
        %s164 = smul.addr %s163, 8
        %s165 = scalar_lea.vmem %s0, %s164
        %v166 = vld [vmem:[%s165] sm:$0xff]
        %v167 = vld [vmem:[%s2] sm:$0x1]
        %v168 = vld [vmem:[%s2 + $0x1] sm:$0x1]
        %v169 = vld [vmem:[%s2 + $0x2] sm:$0x1]
        %v170 = vld [vmem:[%s1] sm:$0xff]
        %v171 = vld [vmem:[%s1 + $0x8] sm:$0xff]
        %v172 = vld [vmem:[%s1 + $0x10] sm:$0xff]
        %v173 = vld [vmem:[%s1 + $0x18] sm:$0xff]
        %v174 = vld [vmem:[%s1 + $0x20] sm:$0xff]
        %v175 = vld [vmem:[%s1 + $0x28] sm:$0xff]
        %v176 = vld [vmem:[%s1 + $0x30] sm:$0xff]
        %v177 = vld [vmem:[%s1 + $0x38] sm:$0xff]
        %v178 = vlaneseq
        %v179 = vshrl.u32 %v178, 7
        %v180 = vsub.s32 0, %v179
        %v181 = vrot.slane %v167, %v180
        %vm182 = vcmask 523264
        %v184 = vsel %vm182, %v166, 0
        %186 = vmatprep.subr.mxu0 0.0
        %187 = vmatpush1.msra.mxu0 %v170
        %188 = vmatprep.subr.mxu0 0.0
        %189 = vmatpush1.msra.mxu0 %v171
        %190 = vmatprep.subr.mxu0 0.0
        %191 = vmatpush1.msra.mxu0 %v172
        %192 = vmatprep.subr.mxu0 0.0
        %193 = vmatpush1.msra.mxu0 %v173
        %194 = vmatprep.subr.mxu0 0.0
        %195 = vmatpush1.msra.mxu0 %v174
        %196 = vmatprep.subr.mxu0 0.0
        %197 = vmatpush1.msra.mxu0 %v175
        %198 = vmatprep.subr.mxu0 0.0
        %199 = vmatpush1.msra.mxu0 %v176
        %200 = vmatprep.subr.mxu0 0.0
        %201 = vmatpush1.msra.mxu0 %v177
        %202 = vmatprep.subr.mxu0 0.0
        %203 = vmatpush1.msra.mxu0 0.0
        %204 = vmatprep.subr.mxu0 0.0
        %205 = vmatpush1.msra.mxu0 0.0
        %206 = vmatprep.subr.mxu0 0.0
        %207 = vmatpush1.msra.mxu0 0.0
        %208 = vmatprep.subr.mxu0 0.0
        %209 = vmatpush1.msra.mxu0 0.0
        %210 = vmatprep.subr.mxu0 0.0
        %211 = vmatpush1.msra.mxu0 0.0
        %212 = vmatprep.subr.mxu0 0.0
        %213 = vmatpush1.msra.mxu0 0.0
        %214 = vmatprep.subr.mxu0 0.0
        %215 = vmatpush1.msra.mxu0 0.0
        %216 = vmatprep.subr.mxu0 0.0
        %217 = vmatpush1.msra.mxu0 0.0
        %218 = vmatprep.subr.mxu0 0.0
        %219 = vmatpush1.msra.mxu0 0.0
        %220 = vmatprep.subr.mxu0 0.0
        %221 = vmatpush1.msra.mxu0 0.0
        %222 = vmatprep.subr.mxu0 0.0
        %223 = vmatpush1.msra.mxu0 0.0
        %224 = vmatprep.subr.mxu0 0.0
        %225 = vmatpush1.msra.mxu0 0.0
        %226 = vmatprep.subr.mxu0 0.0
        %227 = vmatpush1.msra.mxu0 0.0
        %228 = vmatprep.subr.mxu0 0.0
        %229 = vmatpush1.msra.mxu0 0.0
        %230 = vmatprep.subr.mxu0 0.0
        %231 = vmatpush1.msra.mxu0 0.0
        %232 = vmatprep.subr.mxu0 0.0
        %233 = vmatpush1.msra.mxu0 0.0
        %234 = vmatprep.subr.mxu0 0.0
        %235 = vmatpush1.msra.mxu0 0.0
        %236 = vmatprep.subr.mxu0 0.0
        %237 = vmatpush1.msra.mxu0 0.0
        %238 = vmatprep.subr.mxu0 0.0
        %239 = vmatpush1.msra.mxu0 0.0
        %240 = vmatprep.subr.mxu0 0.0
        %241 = vmatpush1.msra.mxu0 0.0
        %242 = vmatprep.subr.mxu0 0.0
        %243 = vmatpush1.msra.mxu0 0.0
        %244 = vmatprep.subr.mxu0 0.0
        %245 = vmatpush1.msra.mxu0 0.0
        %246 = vmatprep.subr.mxu0 0.0
        %247 = vmatpush1.msra.mxu0 0.0
        %248 = vmatprep.subr.mxu0 0.0
        %249 = vmatpush1.msra.mxu0 0.0
        %250 = vmatprep.mubr.f32.mxu0 0.0
        %251 = vmatmul.mubr.f32.gmra.mrb[0].mxu0 %v184
        %v252 = vpop.f32.mrb[0].mxu0
        %v253 = vadd.f32 %v181, %v252
        %v254 = vpop.f32.mrb[0].mxu0
        %255 = vdwg.mxu0
        %v256 = vlaneseq
        %v257 = vand.u32 %v256, 127
        %vm258 = vcmp.lt.s32.totalorder %v257, 64
        %v259 = vmax.f32 %v253, 0.0
        %v260 = vsel %vm258, %v259, %v253
        %261 = vrot.lane.b32.xlu0 %v260, 64
        %v262 = vpop.permute.xlu0 %261
        %v263 = vmul.f32 %v260, %v262
        %265 = vrot.lane.b32.xlu0 %v263, 96
        %v266 = vpop.permute.xlu0 %265
        %v268 = vadd.f32 %v263, %v266
        %v269 = vmul.f32 %v166, %v166
        %271 = vrot.lane.b32.xlu0 %v269, 96
        %v272 = vpop.permute.xlu0 %271
        %vm274 = vcmask 261120
        %v275 = vsel %vm274, %v272, 0.0
        %276 = vadd.xlane.f32.xlu0 %v275
        %v277 = vpop.xlane.xlu0 %276
        %v278 = vrsqrt.pop %v277
        %v279 = vmul.f32 %v277, %v278
        %vm280 = vcmp.eq.f32.partialorder %v277, inf
        %v281 = vsel %vm280, %v277, %v279
        %vm282 = vcmp.eq.f32.partialorder %v277, 0.0
        %v283 = vand.u32 %v277, 2147483648
        %v284 = vsel %vm282, %v283, %v281
        %v285 = vmul.f32 %v268, %v268
        %v286 = vsel %vm274, %v285, 0.0
        %287 = vadd.xlane.f32.xlu0 %v286
        %v288 = vpop.xlane.xlu0 %287
        %v289 = vrsqrt.pop %v288
        %v290 = vmul.f32 %v288, %v289
        %vm291 = vcmp.eq.f32.partialorder %v288, inf
        %v292 = vsel %vm291, %v288, %v290
        %vm293 = vcmp.eq.f32.partialorder %v288, 0.0
        %v294 = vand.u32 %v288, 2147483648
        %v295 = vsel %vm293, %v294, %v292
        %vm296 = vcmp.eq.f32.partialorder %v295, 0.0
        %v297 = vsel %vm296, 1.0, %v295
        %v298 = vadd.f32 %v297, 1e-06
        %v299 = vrcp.pop %v298
        %v300 = vmul.f32 %v284, %v299
        %v301 = vmin.f32 %v300, 1.0
        %v302 = vmul.f32 %v301, %v268
        %303 = vrot.lane.b32.xlu0 %v166, 96
        %v304 = vpop.permute.xlu0 %303
        %v306 = vadd.f32 %v302, %v304
        %v307 = vsel %vm274, %v306, 0.0
        %308 = vadd.xlane.f32.xlu0 %v307
        %v309 = vpop.xlane.xlu0 %308
        %v310 = vrcp.pop 32.0
        %v311 = vmul.f32 %v309, %v310
        %v312 = vsub.f32 %v306, %v311
        %v313 = vmul.f32 %v312, %v312
        %v314 = vsel %vm274, %v313, 0.0
        %315 = vadd.xlane.f32.xlu0 %v314
        %v316 = vpop.xlane.xlu0 %315
        %v317 = vmul.f32 %v316, %v310
        %v318 = vadd.f32 %v317, 1e-05
        %v319 = vrsqrt.pop %v318
        %v320 = vmul.f32 %v312, %v319
        %v321 = vlaneseq
        %v322 = vshrl.u32 %v321, 7
        %v323 = vsub.s32 0, %v322
        %v324 = vrot.slane %v168, %v323
        %v325 = vmul.f32 %v320, %v324
        %v326 = vlaneseq
        %v327 = vshrl.u32 %v326, 7
        %v328 = vsub.s32 0, %v327
        %v329 = vrot.slane %v169, %v328
        %v330 = vadd.f32 %v325, %v329
        %331 = vst.msk [vmem:[%s161] sm:$0xff] %vm274, %v330
        %s332 = sand.u32 %s93, 1
        %s333 = scalar_lea.sflag [#allocation3], %s332
        %s334 = sand.u32 %s93, 1
        %s335 = smul.addr %s334, 8
        %s336 = scalar_lea.vmem [#allocation2], %s335
        // Predicated region
        $region33: #{mag_forward.1} parent=31 // pred_check
          %p337 = pneg %p103
        $region34: #{mag_forward.1} parent=31 // pred_check_branch
          %339 = sbr.rel (%p337) target = $region36
        $region35: #{mag_forward.1} parent=31 // pred_region
          %s341 = ssub.s32 128, 128
          %342 = vsyncadd %s333, %s341
          %s343 = smul.addr %s17, 128
          %s344 = scalar_lea.hbm %s3, %s343
          %s346 = sshll.u32 %s336, 4
          %s347 = int_to_ptr.vmem [resolvable:$true] %s346
          %349 = dma.vmem_to_hbm [thread:$0]  %s347, 128, %s344, %s333
        $region36: #{mag_forward.1} parent=31 // pred_fallthru
          _
      $region32: #{mag_forward.1} parent=5 // pred_fallthru
        _
      %p350 = scmp.le.s32.totalorder 2, %s12
      // Predicated region
      $region37: #{mag_forward.1} parent=5 // pred_check
        %p351 = pneg %p350
      $region38: #{mag_forward.1} parent=5 // pred_check_branch
        %353 = sbr.rel (%p351) target = $region40
      $region39: #{mag_forward.1} parent=5 // pred_region
        %s354 = ssub.s32 %s12, 2
        // Predicated region
        $region41: #{mag_forward.1} parent=39 // pred_check
          %p355 = pneg %p109
        $region42: #{mag_forward.1} parent=39 // pred_check_branch
          %357 = sbr.rel (%p355) target = $region44
        $region43: #{mag_forward.1} parent=39 // pred_region
          %s358 = sand.u32 %s94, 1
          %s359 = scalar_lea.sflag [#allocation3], %s358
          %s360 = sand.u32 %s94, 1
          %s361 = smul.addr %s360, 8
          %s362 = scalar_lea.vmem [#allocation2], %s361
          %363 = dma.done %s359, 128
        $region44: #{mag_forward.1} parent=39 // pred_fallthru
          _
      $region40: #{mag_forward.1} parent=5 // pred_fallthru
        _
    $region6: #{mag_forward.1} parent=1 // loop_footer
      %s16 = sadd.s32 1, %s12
    $region7: #{mag_forward.1} parent=1 // loop_footer_branch
      %11 = sbr.rel target = $region3
    $region8: #{mag_forward.1} parent=1 // loop_exit
      _
    %364 = vsyncpa [#allocation3], 1
    %s365 = scalar_lea.sflag [#allocation3], 1
    %366 = vsyncpa %s365, 1

</llo_original>
